<compile_context>
chip_gen: v6e
topology: v6e:2x2x1
jax: 0.10.0
libtpu: 0.0.40
codegen_flags: <defaults>
</compile_context>

<pallas_src>
import jax
import jax.numpy as jnp
from jax.experimental import pallas as pl
from jax.experimental.pallas import tpu as pltpu

BN_EPS = 1e-5
_VMEM_LIMIT = 32 * 1024 * 1024  # fits v7x (64 MiB physical) with headroom; plenty for these tiles


def _conv1d_k3(x_cl, w_flat):
    """Conv1d(k=3, padding=1) for one batch element, bias omitted (cancelled by BN).

    x_cl:   (Cin, L)       NCL tile straight from HBM.
    w_flat: (3*Cin, Cout)  taps folded into the contraction dim: w_flat[k*Cin+i, c] = w[c, i, k].
    Returns (L, Cout) float32.
    """
    x_lc = x_cl.T                                        # (L, Cin) channels-last for the MXU
    length, cin = x_lc.shape
    zrow = jnp.zeros((1, cin), jnp.float32)
    x_prev = jnp.concatenate([zrow, x_lc[:length - 1, :]], axis=0)   # x[:, l-1], zero at l=0
    x_next = jnp.concatenate([x_lc[1:, :], zrow], axis=0)            # x[:, l+1], zero at l=L-1
    x3 = jnp.concatenate([x_prev, x_lc, x_next], axis=1)             # (L, 3*Cin) im2col
    return jnp.dot(x3, w_flat, preferred_element_type=jnp.float32)   # single matmul, K = 3*Cin


def conv3_stats_kernel(x_ref, w_ref, sum_ref, ssq_ref):
    """Pass 1: per-channel sum and sum-of-squares of the conv output (global batch stats)."""
    @pl.when(pl.program_id(0) == 0)
    def _init():
        sum_ref[...] = jnp.zeros_like(sum_ref)
        ssq_ref[...] = jnp.zeros_like(ssq_ref)

    y = _conv1d_k3(x_ref[...], w_ref[...])               # (L, Cout) f32
    sum_ref[...] += jnp.sum(y, axis=0, keepdims=True)    # (1, Cout)
    ssq_ref[...] += jnp.sum(y * y, axis=0, keepdims=True)


def conv3_fwd_kernel(x_ref, w_ref, scale_ref, shift_ref, o_ref):
    """Pass 2: conv (recomputed) + fused BN scale/shift + ReLU + MaxPool1d(3), NCL output."""
    y = _conv1d_k3(x_ref[...], w_ref[...])                           # (L, Cout)
    y = jnp.maximum(y * scale_ref[...] + shift_ref[...], 0.0)        # fused BN + ReLU
    cout, lout = o_ref.shape
    # Non-overlapping windows of 3 along L; reshape keeps the minor (Cout) dim intact,
    # the max is a cheap sublane reduction.
    p = jnp.max(y[:lout * 3, :].reshape(lout, 3, cout), axis=1)      # (Lout, Cout)
    o_ref[...] = p.T                                                 # (Cout, Lout) lane-dense NCL


def conv3_forward(x_ncl, weight, bias, gamma, beta):
    """x_ncl: (N, Cin, L). weight: (Cout, Cin, 3). Returns (N, Cout, L // 3)."""
    n, cin, length = x_ncl.shape
    cout = weight.shape[0]
    lout = length // 3

    x = x_ncl.astype(jnp.float32)
    # Fold taps into the contraction dim: w_flat[k*Cin + i, c] = weight[c, i, k].
    w_flat = jnp.transpose(weight, (2, 1, 0)).reshape(3 * cin, cout).astype(jnp.float32)
    del bias  # conv bias is mathematically cancelled by training-mode BatchNorm mean subtraction

    # ---- pass 1: accumulate per-channel sum / sumsq of the conv output over the whole batch ----
    s, ssq = pl.pallas_call(
        conv3_stats_kernel,
        out_shape=(jax.ShapeDtypeStruct((1, cout), jnp.float32),
                   jax.ShapeDtypeStruct((1, cout), jnp.float32)),
        grid=(n,),
        in_specs=[
            pl.BlockSpec((None, cin, length), lambda i: (i, 0, 0)),
            pl.BlockSpec((3 * cin, cout), lambda i: (0, 0)),
        ],
        out_specs=(
            pl.BlockSpec((1, cout), lambda i: (0, 0)),
            pl.BlockSpec((1, cout), lambda i: (0, 0)),
        ),
        compiler_params=pltpu.CompilerParams(
            dimension_semantics=("arbitrary",),          # stats accumulate across the grid
            vmem_limit_bytes=_VMEM_LIMIT),
    )(x, w_flat)

    # ---- fold BN (batch stats, biased variance) into one per-channel scale/shift ----
    cnt = jnp.float32(n * length)
    mean = s / cnt
    var = ssq / cnt - mean * mean                        # biased variance (PyTorch training BN)
    inv = jax.lax.rsqrt(var + BN_EPS)
    scale = gamma.reshape(1, cout).astype(jnp.float32) * inv
    shift = beta.reshape(1, cout).astype(jnp.float32) - mean * scale

    # ---- pass 2: conv + BN + ReLU + pool, written directly in NCL ----
    out = pl.pallas_call(
        conv3_fwd_kernel,
        out_shape=jax.ShapeDtypeStruct((n, cout, lout), jnp.float32),
        grid=(n,),
        in_specs=[
            pl.BlockSpec((None, cin, length), lambda i: (i, 0, 0)),
            pl.BlockSpec((3 * cin, cout), lambda i: (0, 0)),
            pl.BlockSpec((1, cout), lambda i: (0, 0)),
            pl.BlockSpec((1, cout), lambda i: (0, 0)),
        ],
        out_specs=pl.BlockSpec((None, cout, lout), lambda i: (i, 0, 0)),
        compiler_params=pltpu.CompilerParams(
            dimension_semantics=("parallel",),           # batch tiles are independent (2 TCs on v7x)
            vmem_limit_bytes=_VMEM_LIMIT),
    )(x, w_flat, scale, shift)

    return out                                           # (N, Cout, Lout), no trailing transpose


def _reference(x_ncl, weight, bias, gamma, beta):
    """Pure-JAX reference replicating the PyTorch module forward (training-mode BN)."""
    n, _, length = x_ncl.shape
    cout = weight.shape[0]
    lout = length // 3
    y = jax.lax.conv_general_dilated(
        x_ncl, weight, window_strides=(1,), padding=((1, 1),),
        dimension_numbers=("NCH", "OIH", "NCH")) + bias[None, :, None]
    mean = y.mean(axis=(0, 2), keepdims=True)
    var = ((y - mean) ** 2).mean(axis=(0, 2), keepdims=True)
    y = gamma[None, :, None] * (y - mean) / jnp.sqrt(var + BN_EPS) + beta[None, :, None]
    y = jnp.maximum(y, 0.0)
    return y[:, :, :lout * 3].reshape(n, cout, lout, 3).max(axis=-1)


if __name__ == "__main__":
    # Small shapes: batch=2, input_channels=4, output_channels=8, length=12
    N, CIN, COUT, L = 2, 4, 8, 12

    key = jax.random.PRNGKey(0)
    kx, kw, kb = jax.random.split(key, 3)

    x = jax.random.normal(kx, (N, CIN, L), dtype=jnp.float32)

    # Deterministic PyTorch-style init: Conv1d uses U(-1/sqrt(fan_in), 1/sqrt(fan_in))
    fan_in = CIN * 3
    bound = 1.0 / jnp.sqrt(jnp.float32(fan_in))
    weight = jax.random.uniform(kw, (COUT, CIN, 3), minval=-bound, maxval=bound, dtype=jnp.float32)
    bias = jax.random.uniform(kb, (COUT,), minval=-bound, maxval=bound, dtype=jnp.float32)
    # BatchNorm1d defaults: weight=1, bias=0
    gamma = jnp.ones((COUT,), jnp.float32)
    beta = jnp.zeros((COUT,), jnp.float32)

    out = conv3_forward(x, weight, bias, gamma, beta)
    out = jax.block_until_ready(out)

    ref = _reference(x, weight, bias, gamma, beta)
    assert out.shape == (N, COUT, L // 3), out.shape
    assert jnp.allclose(out, ref, atol=1e-4, rtol=1e-4), float(jnp.max(jnp.abs(out - ref)))

    print("KERNEL_OK")
</pallas_src>

<mosaic_0001>
module attributes {stable_mosaic.version = 11 : i64} {
  func.func @conv3_stats_kernel(%arg0: i32, %arg1: memref<1x4x12xf32, #tpu.memory_space<vmem>>, %arg2: memref<12x8xf32, #tpu.memory_space<vmem>>, %arg3: memref<1x8xf32, #tpu.memory_space<vmem>>, %arg4: memref<1x8xf32, #tpu.memory_space<vmem>>) attributes {dimension_semantics = [#tpu.dimension_semantics<arbitrary>], iteration_bounds = array<i64: 2>, scalar_prefetch = 0 : i64, scratch_operands = 0 : i64, tpu.core_type = #tpu.core_type<tc>, window_params = [{transform_indices = @transform_0, window_bounds = array<i64: 1, 4, 12>}, {pipeline_mode = #tpu.pipeline_mode<synchronous>, transform_indices = @transform_1, window_bounds = array<i64: 12, 8>}, {pipeline_mode = #tpu.pipeline_mode<synchronous>, transform_indices = @transform_2, window_bounds = array<i64: 1, 8>}, {pipeline_mode = #tpu.pipeline_mode<synchronous>, transform_indices = @transform_3, window_bounds = array<i64: 1, 8>}]} {
    %c0_i32 = arith.constant 0 : i32
    %0 = arith.cmpi eq, %arg0, %c0_i32 : i32
    %1 = arith.extui %0 : i1 to i32
    %c0_i32_0 = arith.constant 0 : i32
    %2 = arith.cmpi ne, %1, %c0_i32_0 : i32
    scf.if %2 {
      %cst_16 = arith.constant 0.000000e+00 : f32
      %25 = vector.broadcast %cst_16 : f32 to vector<1x8xf32>
      %c0_17 = arith.constant 0 : index
      %c0_18 = arith.constant 0 : index
      %26 = vector.load %arg3[%c0_17, %c0_18] : memref<1x8xf32, #tpu.memory_space<vmem>>, vector<1x8xf32>
      tpu.vector_store %arg3[%c0_17, %c0_18], %25 {strides = array<i32>} : memref<1x8xf32, #tpu.memory_space<vmem>>, vector<1x8xf32>,
      %cst_19 = arith.constant 0.000000e+00 : f32
      %27 = vector.broadcast %cst_19 : f32 to vector<1x8xf32>
      %c0_20 = arith.constant 0 : index
      %c0_21 = arith.constant 0 : index
      %28 = vector.load %arg4[%c0_20, %c0_21] : memref<1x8xf32, #tpu.memory_space<vmem>>, vector<1x8xf32>
      tpu.vector_store %arg4[%c0_20, %c0_21], %27 {strides = array<i32>} : memref<1x8xf32, #tpu.memory_space<vmem>>, vector<1x8xf32>,
    } else {
    }
    %c0 = arith.constant 0 : index
    %c0_1 = arith.constant 0 : index
    %c0_2 = arith.constant 0 : index
    %3 = vector.load %arg1[%c0, %c0_1, %c0_2] : memref<1x4x12xf32, #tpu.memory_space<vmem>>, vector<1x4x12xf32>
    %4 = vector.shape_cast %3 : vector<1x4x12xf32> to vector<4x12xf32>
    %c0_3 = arith.constant 0 : index
    %c0_4 = arith.constant 0 : index
    %5 = vector.load %arg2[%c0_3, %c0_4] : memref<12x8xf32, #tpu.memory_space<vmem>>, vector<12x8xf32>
    %6 = tpu.transpose %4, [1, 0] : vector<4x12xf32> -> vector<12x4xf32>
    %cst = arith.constant 0.000000e+00 : f32
    %7 = vector.broadcast %cst : f32 to vector<1x4xf32>
    %8 = vector.extract_strided_slice %6 {offsets = [0, 0], sizes = [11, 4], strides = [1, 1]} : vector<12x4xf32> to vector<11x4xf32>
    %9 = tpu.concatenate %7, %8 in 0 : vector<1x4xf32>, vector<11x4xf32> -> vector<12x4xf32>
    %10 = vector.extract_strided_slice %6 {offsets = [1, 0], sizes = [11, 4], strides = [1, 1]} : vector<12x4xf32> to vector<11x4xf32>
    %11 = tpu.concatenate %10, %7 in 0 : vector<11x4xf32>, vector<1x4xf32> -> vector<12x4xf32>
    %12 = tpu.concatenate %9, %6, %11 in 1 : vector<12x4xf32>, vector<12x4xf32>, vector<12x4xf32> -> vector<12x12xf32>
    %cst_5 = arith.constant dense<0.000000e+00> : vector<12x8xf32>
    %13 = tpu.matmul %12, %5, %cst_5 {dimension_numbers = #tpu.dot_dimension_numbers<[1], [0], [0], [1], [0, 0, 1, 1], [], []>} : vector<12x12xf32>, vector<12x8xf32>, vector<12x8xf32> -> vector<12x8xf32>
    %c0_6 = arith.constant 0 : index
    %c0_7 = arith.constant 0 : index
    %14 = vector.load %arg3[%c0_6, %c0_7] : memref<1x8xf32, #tpu.memory_space<vmem>>, vector<1x8xf32>
    %cst_8 = arith.constant dense<0.000000e+00> : vector<8xf32>
    %15 = vector.multi_reduction <add>, %13, %cst_8 [0] : vector<12x8xf32> to vector<8xf32>
    %16 = vector.shape_cast %15 : vector<8xf32> to vector<1x8xf32>
    %17 = arith.addf %14, %16 : vector<1x8xf32>
    %c0_9 = arith.constant 0 : index
    %c0_10 = arith.constant 0 : index
    %18 = vector.load %arg3[%c0_9, %c0_10] : memref<1x8xf32, #tpu.memory_space<vmem>>, vector<1x8xf32>
    tpu.vector_store %arg3[%c0_9, %c0_10], %17 {strides = array<i32>} : memref<1x8xf32, #tpu.memory_space<vmem>>, vector<1x8xf32>,
    %c0_11 = arith.constant 0 : index
    %c0_12 = arith.constant 0 : index
    %19 = vector.load %arg4[%c0_11, %c0_12] : memref<1x8xf32, #tpu.memory_space<vmem>>, vector<1x8xf32>
    %20 = arith.mulf %13, %13 : vector<12x8xf32>
    %cst_13 = arith.constant dense<0.000000e+00> : vector<8xf32>
    %21 = vector.multi_reduction <add>, %20, %cst_13 [0] : vector<12x8xf32> to vector<8xf32>
    %22 = vector.shape_cast %21 : vector<8xf32> to vector<1x8xf32>
    %23 = arith.addf %19, %22 : vector<1x8xf32>
    %c0_14 = arith.constant 0 : index
    %c0_15 = arith.constant 0 : index
    %24 = vector.load %arg4[%c0_14, %c0_15] : memref<1x8xf32, #tpu.memory_space<vmem>>, vector<1x8xf32>
    tpu.vector_store %arg4[%c0_14, %c0_15], %23 {strides = array<i32>} : memref<1x8xf32, #tpu.memory_space<vmem>>, vector<1x8xf32>,
    return
  }
  func.func @transform_0(%arg0: i32) -> (i32, i32, i32) {
    %c0_i32 = arith.constant 0 : i32
    %c0_i32_0 = arith.constant 0 : i32
    %c0_i32_1 = arith.constant 0 : i32
    return %arg0, %c0_i32, %c0_i32_0 : i32, i32, i32
  }
  func.func @transform_1(%arg0: i32) -> (i32, i32) {
    %c0_i32 = arith.constant 0 : i32
    %c0_i32_0 = arith.constant 0 : i32
    %c0_i32_1 = arith.constant 0 : i32
    return %c0_i32, %c0_i32_0 : i32, i32
  }
  func.func @transform_2(%arg0: i32) -> (i32, i32) {
    %c0_i32 = arith.constant 0 : i32
    %c0_i32_0 = arith.constant 0 : i32
    %c0_i32_1 = arith.constant 0 : i32
    return %c0_i32, %c0_i32_0 : i32, i32
  }
  func.func @transform_3(%arg0: i32) -> (i32, i32) {
    %c0_i32 = arith.constant 0 : i32
    %c0_i32_0 = arith.constant 0 : i32
    %c0_i32_1 = arith.constant 0 : i32
    return %c0_i32, %c0_i32_0 : i32, i32
  }
}

</mosaic_0001>

<llo_original>
// kernel: tpu_custom_call.1
$region0: #{tpu_custom_call.1}
  #allocation0 [shape = 'u32[]', space=smem, size = 0x4, offset = 0x4, fixed_abs, tag = 'smem constant byte address 0x4 - core index']
  #allocation1 [shape = 'u32[144,128]{1,0:T(1,128)}', space=vmem, size = 0x12000, scoped, tag = 'internal scratch']
  %s0 = inlined_call_operand.vmem [shape: f32[2,4,12], index: 0, kind: input, shape index: {}]
  %s1 = inlined_call_operand.vmem [shape: f32[12,8], index: 1, kind: input, shape index: {}]
  %s2 = inlined_call_operand.hbm [shape: f32[1,8], index: 2, kind: output, shape index: {0}]
  %s3 = inlined_call_operand.hbm [shape: f32[1,8], index: 3, kind: output, shape index: {1}]
  %4 = xla_tuple %s2, %s3
  %s5 = sld [smem:[#allocation0]]
  $region53: #{tpu_custom_call.1} parent=0
    _
  %s7 = ssub.s32 1, %s5
  %s8 = scalar_select 0, %s7, %s5
  $region1: #{tpu_custom_call.1} parent=0
    #allocation2 [shape = 'u8[512]{0}', space=vmem, size = 0x400, scoped, tag = 'output window, operand 0, single buffered']
    #allocation3 [shape = 's32[2]{0}', space=sflag, size = 0x8, scoped, tag = 'scoped memory for tpu_custom_call.1']
    #allocation4 [shape = 'u8[512]{0}', space=vmem, size = 0x400, scoped, tag = 'output window, operand 1, single buffered']
    #allocation5 [shape = 's32[1]{0}', space=sflag, size = 0x4, scoped, tag = 'scoped memory for tpu_custom_call.1']
    %9 = vsyncpa [#allocation3], 0
    %10 = vsyncpa [#allocation5], 0
    loop: start=0, step=1, limit=4
    $region2: #{tpu_custom_call.1} parent=1 // loop_pre_header
      _
    $region3: #{tpu_custom_call.1} parent=1 // loop_header
      %s12 = sphi 0, %s16
      %p13 = scmp.ge.s32.totalorder %s12, 4
      %s22 = sphi 0, %s24
      %s25 = sphi 0, %s22
      %s26 = sphi 0, %s25
      %s42 = sphi 0, %s26
      %s46 = sphi 0, %s46
      %s48 = sphi 0, %s46
      %s49 = sphi 0, %s48
      %s63 = sphi 0, %s49
      %s67 = sphi 0, %s67
      %s69 = sphi 0, %s67
      %s70 = sphi 0, %s69
      %s84 = sphi 0, %s70
      %s88 = sphi 0, %s88
      %s90 = sphi 0, %s88
      %s91 = sphi 0, %s90
      %s105 = sphi 0, %s91
    $region4: #{tpu_custom_call.1} parent=1 // loop_header_branch
      %15 = sbr.rel (%p13) target = $region8
    $region5: #{tpu_custom_call.1} parent=1 // loop_body
      %s17 = ssub.s32 %s12, 1
      %s18 = ssub.s32 %s12, 2
      %s19 = sadd.s32 %s12, 1
      %s20 = ssub.s32 %s12, %s19
      %p21 = scmp.eq.s32.totalorder %s20, 0
      %s23 = sadd.s32 %s22, 1
      %s24 = scalar_select %p21, %s22, %s23
      %p27 = pneg %p21
      %p28 = scmp.eq.s32.totalorder %s12, 1
      %p29 = por %p27, %p28
      %p30 = scmp.ne.s32.totalorder %s22, %s25
      %p31 = scmp.eq.s32.totalorder %s12, 0
      %p32 = por %p30, %p31
      %p33 = scmp.ne.s32.totalorder %s22, %s25
      %p34 = scmp.eq.s32.totalorder %s17, 1
      %p35 = por %p33, %p34
      %p36 = scmp.ne.s32.totalorder %s25, %s26
      %p37 = scmp.eq.s32.totalorder %s17, 0
      %p38 = por %p36, %p37
      %p39 = scmp.ne.s32.totalorder %s25, %s26
      %p40 = scmp.eq.s32.totalorder %s18, 1
      %p41 = por %p39, %p40
      %p43 = scmp.ne.s32.totalorder %s26, %s42
      %p44 = scmp.eq.s32.totalorder %s18, 0
      %p45 = por %p43, %p44
      %s47 = sadd.s32 %s46, 1
      %p50 = scmp.eq.s32.totalorder %s12, 1
      %p51 = scmp.ne.s32.totalorder %s46, %s48
      %p52 = scmp.eq.s32.totalorder %s12, 0
      %p53 = por %p51, %p52
      %p54 = scmp.ne.s32.totalorder %s46, %s48
      %p55 = scmp.eq.s32.totalorder %s17, 1
      %p56 = por %p54, %p55
      %p57 = scmp.ne.s32.totalorder %s48, %s49
      %p58 = scmp.eq.s32.totalorder %s17, 0
      %p59 = por %p57, %p58
      %p60 = scmp.ne.s32.totalorder %s48, %s49
      %p61 = scmp.eq.s32.totalorder %s18, 1
      %p62 = por %p60, %p61
      %p64 = scmp.ne.s32.totalorder %s49, %s63
      %p65 = scmp.eq.s32.totalorder %s18, 0
      %p66 = por %p64, %p65
      %s68 = sadd.s32 %s67, 1
      %p71 = scmp.eq.s32.totalorder %s12, 1
      %p72 = scmp.ne.s32.totalorder %s67, %s69
      %p73 = scmp.eq.s32.totalorder %s12, 0
      %p74 = por %p72, %p73
      %p75 = scmp.ne.s32.totalorder %s67, %s69
      %p76 = scmp.eq.s32.totalorder %s17, 1
      %p77 = por %p75, %p76
      %p78 = scmp.ne.s32.totalorder %s69, %s70
      %p79 = scmp.eq.s32.totalorder %s17, 0
      %p80 = por %p78, %p79
      %p81 = scmp.ne.s32.totalorder %s69, %s70
      %p82 = scmp.eq.s32.totalorder %s18, 1
      %p83 = por %p81, %p82
      %p85 = scmp.ne.s32.totalorder %s70, %s84
      %p86 = scmp.eq.s32.totalorder %s18, 0
      %p87 = por %p85, %p86
      %s89 = sadd.s32 %s88, 1
      %p92 = scmp.eq.s32.totalorder %s12, 1
      %p93 = scmp.ne.s32.totalorder %s88, %s90
      %p94 = scmp.eq.s32.totalorder %s12, 0
      %p95 = por %p93, %p94
      %p96 = scmp.ne.s32.totalorder %s88, %s90
      %p97 = scmp.eq.s32.totalorder %s17, 1
      %p98 = por %p96, %p97
      %p99 = scmp.ne.s32.totalorder %s90, %s91
      %p100 = scmp.eq.s32.totalorder %s17, 0
      %p101 = por %p99, %p100
      %p102 = scmp.ne.s32.totalorder %s90, %s91
      %p103 = scmp.eq.s32.totalorder %s18, 1
      %p104 = por %p102, %p103
      %p106 = scmp.ne.s32.totalorder %s91, %s105
      %p107 = scmp.eq.s32.totalorder %s18, 0
      %p108 = por %p106, %p107
      %p109 = scmp.le.s32.totalorder 1, %s12
      %p110 = scmp.lt.s32.totalorder %s12, 3
      %p111 = pnand %p109, %p110
      %p112 = pneg %p111
      // Predicated region
      $region9: #{tpu_custom_call.1} parent=5 // pred_check
        _
      $region10: #{tpu_custom_call.1} parent=5 // pred_check_branch
        %114 = sbr.rel (%p111) target = $region12
      $region11: #{tpu_custom_call.1} parent=5 // pred_region
        %s115 = ssub.s32 %s12, 1
        // Predicated region
        $region13: #{tpu_custom_call.1} parent=11 // pred_check
          %p116 = pneg %p59
        $region14: #{tpu_custom_call.1} parent=11 // pred_check_branch
          %118 = sbr.rel (%p116) target = $region16
        $region15: #{tpu_custom_call.1} parent=11 // pred_region
          _
        $region16: #{tpu_custom_call.1} parent=11 // pred_fallthru
          _
      $region12: #{tpu_custom_call.1} parent=5 // pred_fallthru
        _
      %p119 = scmp.lt.s32.totalorder %s12, 2
      // Predicated region
      $region17: #{tpu_custom_call.1} parent=5 // pred_check
        %p120 = pneg %p119
      $region18: #{tpu_custom_call.1} parent=5 // pred_check_branch
        %122 = sbr.rel (%p120) target = $region20
      $region19: #{tpu_custom_call.1} parent=5 // pred_region
        // Predicated region
        $region21: #{tpu_custom_call.1} parent=19 // pred_check
          %p123 = pneg %p32
        $region22: #{tpu_custom_call.1} parent=19 // pred_check_branch
          %125 = sbr.rel (%p123) target = $region24
        $region23: #{tpu_custom_call.1} parent=19 // pred_region
          %p126 = scmp.lt.s32.totalorder %s12, 1
          %s127 = scalar_select %p126, %s12, 1
          %s128 = smul.addr %s127, 4
          %s129 = scalar_lea.vmem %s0, %s128
        $region24: #{tpu_custom_call.1} parent=19 // pred_fallthru
          _
      $region20: #{tpu_custom_call.1} parent=5 // pred_fallthru
        _
      %p130 = scmp.le.s32.totalorder 1, %s12
      %p131 = scmp.lt.s32.totalorder %s12, 3
      %p132 = pnand %p130, %p131
      %p133 = pneg %p132
      // Predicated region
      $region25: #{tpu_custom_call.1} parent=5 // pred_check
        _
      $region26: #{tpu_custom_call.1} parent=5 // pred_check_branch
        %135 = sbr.rel (%p132) target = $region28
      $region27: #{tpu_custom_call.1} parent=5 // pred_region
        %s136 = ssub.s32 %s12, 1
        %p137 = scmp.lt.s32.totalorder %s17, 1
        %s138 = scalar_select %p137, %s17, 1
        %s139 = smul.addr %s138, 4
        %s140 = scalar_lea.vmem %s0, %s139
        %p141 = pneg %p38
        %p142 = pneg %p35
        %p143 = pneg %p59
        %p144 = pneg %p56
        %p145 = pneg %p80
        %p146 = pneg %p77
        %p147 = pneg %p101
        %p148 = pneg %p98
        %p149 = scmp.lt.s32.totalorder %s17, 1
        %s150 = scalar_select %p149, %s17, 1
        %s151 = smul.addr %s150, 4
        %s152 = scalar_lea.vmem %s0, %s151
        %p153 = scmp.eq.s32.totalorder %s17, 0
        // Predicated region
        $region29: #{tpu_custom_call.1} parent=27 // pred_check
          %p154 = pneg %p153
        $region30: #{tpu_custom_call.1} parent=27 // pred_check_branch
          %156 = sbr.rel (%p154) target = $region32
        $region31: #{tpu_custom_call.1} parent=27 // pred_region
          %vm157 = vcmask 57344
          %158 = vst.msk [vmem:[#allocation2] sm:$0x1] %vm157, 0.0
          %159 = vst.msk [vmem:[#allocation4] sm:$0x1] %vm157, 0.0
        $region32: #{tpu_custom_call.1} parent=27 // pred_fallthru
          _
        %v160 = vld [vmem:[%s152] sm:$0xf]
        %v161 = vld [vmem:[%s1] sm:$0xff]
        %v162 = vld [vmem:[%s1 + $0x8] sm:$0xf]
        %163 = vxpose.xlu0.b32.start [1/16] %v160, 128
        %164 = vxpose.xlu0.b32.cont [2/16] 0.0, 128
        %165 = vxpose.xlu0.b32.cont [3/16] 0.0, 128
        %166 = vxpose.xlu0.b32.cont [4/16] 0.0, 128
        %167 = vxpose.xlu0.b32.cont [5/16] 0.0, 128
        %168 = vxpose.xlu0.b32.cont [6/16] 0.0, 128
        %169 = vxpose.xlu0.b32.cont [7/16] 0.0, 128
        %170 = vxpose.xlu0.b32.cont [8/16] 0.0, 128
        %171 = vxpose.xlu0.b32.cont [9/16] 0.0, 128
        %172 = vxpose.xlu0.b32.cont [10/16] 0.0, 128
        %173 = vxpose.xlu0.b32.cont [11/16] 0.0, 128
        %174 = vxpose.xlu0.b32.cont [12/16] 0.0, 128
        %175 = vxpose.xlu0.b32.cont [13/16] 0.0, 128
        %176 = vxpose.xlu0.b32.cont [14/16] 0.0, 128
        %177 = vxpose.xlu0.b32.cont [15/16] 0.0, 128
        %178 = vxpose.xlu0.b32.end [16/16] 0.0, 128
        %v179 = vpop.trf.xlu0
        %v180 = vpop.trf.xlu0
        %v181 = vpop.trf.xlu0
        %v182 = vpop.trf.xlu0
        %v183 = vpop.trf.xlu0
        %v184 = vpop.trf.xlu0
        %v185 = vpop.trf.xlu0
        %v186 = vpop.trf.xlu0
        %v187 = vpop.trf.xlu0
        %v188 = vpop.trf.xlu0
        %v189 = vpop.trf.xlu0
        %v190 = vpop.trf.xlu0
        %v191 = vpop.trf.xlu0
        %v192 = vpop.trf.xlu0
        %v193 = vpop.trf.xlu0
        %v194 = vpop.trf.xlu0
        %vm197 = vcmask 1040384
        %v198 = vrot.slane %v179, 7
        %v199 = vrot.slane %v180, 7
        %v200 = vsel %vm197, %v198, %v199
        %v203 = vsel %vm197, 0.0, %v198
        %vm204 = vcmask 1046528
        %v205 = vrot.slane %v179, 1
        %v206 = vrot.slane %v180, 1
        %v207 = vsel %vm204, %v205, %v206
        %vm209 = vcmask 1042432
        %v210 = vsel %vm209, %v206, 0.0
        %211 = vrot.lane.b32.xlu0 %v179, 4
        %v212 = vpop.permute.xlu0 %211
        %213 = vrot.lane.b32.xlu0 %v180, 4
        %v214 = vpop.permute.xlu0 %213
        %218 = vrot.lane.b32.xlu0 %v207, 8
        %v219 = vpop.permute.xlu0 %218
        %220 = vrot.lane.b32.xlu0 %v210, 8
        %v221 = vpop.permute.xlu0 %220
        %vm224 = vcmask 31744
        %v225 = vsel %vm224, %v203, %v212
        %v226 = vsel %vm224, %v200, %v214
        %vm227 = vcmask 64512
        %v228 = vsel %vm227, %v225, %v219
        %v229 = vsel %vm227, %v226, %v221
        %vm230 = vcmask 97280
        %v232 = vsel %vm230, %v228, 0
        %v235 = vsel %vm230, %v229, 0
        %vm237 = vcmask 1043456
        %v239 = vsel %vm237, %v162, 0
        %241 = vmatprep.subr.mxu0 0.0
        %242 = vmatpush1.msra.mxu0 0.0
        %243 = vmatprep.subr.mxu0 0.0
        %244 = vmatpush1.msra.mxu0 0.0
        %245 = vmatprep.subr.mxu0 0.0
        %246 = vmatpush1.msra.mxu0 0.0
        %247 = vmatprep.subr.mxu0 0.0
        %248 = vmatpush1.msra.mxu0 0.0
        %249 = vmatprep.subr.mxu0 0.0
        %250 = vmatpush1.msra.mxu0 0.0
        %251 = vmatprep.subr.mxu0 0.0
        %252 = vmatpush1.msra.mxu0 0.0
        %253 = vmatprep.subr.mxu0 0.0
        %254 = vmatpush1.msra.mxu0 0.0
        %255 = vmatprep.subr.mxu0 0.0
        %256 = vmatpush1.msra.mxu0 0.0
        %257 = vmatprep.subr.mxu0 0.0
        %258 = vmatpush1.msra.mxu0 0.0
        %259 = vmatprep.subr.mxu0 0.0
        %260 = vmatpush1.msra.mxu0 0.0
        %261 = vmatprep.subr.mxu0 0.0
        %262 = vmatpush1.msra.mxu0 0.0
        %263 = vmatprep.subr.mxu0 0.0
        %264 = vmatpush1.msra.mxu0 0.0
        %265 = vmatprep.subr.mxu0 0.0
        %266 = vmatpush1.msra.mxu0 0.0
        %267 = vmatprep.subr.mxu0 0.0
        %268 = vmatpush1.msra.mxu0 0.0
        %269 = vmatprep.subr.mxu0 0.0
        %270 = vmatpush1.msra.mxu0 %v239
        %271 = vmatprep.subr.mxu0 0.0
        %272 = vmatpush1.msra.mxu0 %v161
        %273 = vmatprep.subr.mxu0 0.0
        %274 = vmatpush2.msra.mxu0 0.0
        %275 = vmatprep.subr.mxu0 0.0
        %276 = vmatpush2.msra.mxu0 0.0
        %277 = vmatprep.subr.mxu0 0.0
        %278 = vmatpush2.msra.mxu0 0.0
        %279 = vmatprep.subr.mxu0 0.0
        %280 = vmatpush2.msra.mxu0 0.0
        %281 = vmatprep.subr.mxu0 0.0
        %282 = vmatpush2.msra.mxu0 0.0
        %283 = vmatprep.subr.mxu0 0.0
        %284 = vmatpush2.msra.mxu0 0.0
        %285 = vmatprep.subr.mxu0 0.0
        %286 = vmatpush2.msra.mxu0 0.0
        %287 = vmatprep.subr.mxu0 0.0
        %288 = vmatpush2.msra.mxu0 0.0
        %289 = vmatprep.subr.mxu0 0.0
        %290 = vmatpush2.msra.mxu0 0.0
        %291 = vmatprep.subr.mxu0 0.0
        %292 = vmatpush2.msra.mxu0 0.0
        %293 = vmatprep.subr.mxu0 0.0
        %294 = vmatpush2.msra.mxu0 0.0
        %295 = vmatprep.subr.mxu0 0.0
        %296 = vmatpush2.msra.mxu0 0.0
        %297 = vmatprep.subr.mxu0 0.0
        %298 = vmatpush2.msra.mxu0 0.0
        %299 = vmatprep.subr.mxu0 0.0
        %300 = vmatpush2.msra.mxu0 0.0
        %301 = vmatprep.subr.mxu0 0.0
        %302 = vmatpush2.msra.mxu0 0.0
        %303 = vmatprep.subr.mxu0 0.0
        %304 = vmatpush2.msra.mxu0 0.0
        %305 = vmatprep.mubr.f32.mxu0 0.0
        %306 = vmatmul.mubr.f32.gmra.mxu0 %v232
        %v307 = vpop.f32.mrf.mxu0
        %v308 = vadd.f32 0.0, %v307
        %v309 = vpop.f32.mrf.mxu0
        %310 = vmatprep.mubr.f32.mxu0 0.0
        %311 = vmatmul.mubr.f32.gmra.mxu0 %v235
        %v312 = vpop.f32.mrf.mxu0
        %v313 = vadd.f32 0.0, %v312
        %v314 = vpop.f32.mrf.mxu0
        %315 = vdwg.mxu0
        %v316 = vld [vmem:[#allocation2] sm:$0x1]
        %v317 = vsel %vm227, %v308, 0.0
        %vm318 = vcmask 60416
        %v319 = vsel %vm318, %v313, 0.0
        %v320 = vadd.f32 %v317, %v319
        %v321 = vrot.slane %v320, 4
        %v322 = vadd.f32 %v320, %v321
        %v323 = vrot.slane %v322, 2
        %v324 = vadd.f32 %v322, %v323
        %v325 = vrot.slane %v324, 1
        %v326 = vadd.f32 %v324, %v325
        %v327 = vadd.f32 %v316, %v326
        %vm328 = vcmask 57344
        %329 = vst.msk [vmem:[#allocation2] sm:$0x1] %vm328, %v327
        %v330 = vld [vmem:[#allocation4] sm:$0x1]
        %v331 = vmul.f32 %v308, %v308
        %v332 = vmul.f32 %v313, %v313
        %v333 = vsel %vm227, %v331, 0.0
        %v334 = vsel %vm318, %v332, 0.0
        %v335 = vadd.f32 %v333, %v334
        %v336 = vrot.slane %v335, 4
        %v337 = vadd.f32 %v335, %v336
        %v338 = vrot.slane %v337, 2
        %v339 = vadd.f32 %v337, %v338
        %v340 = vrot.slane %v339, 1
        %v341 = vadd.f32 %v339, %v340
        %v342 = vadd.f32 %v330, %v341
        %343 = vst.msk [vmem:[#allocation4] sm:$0x1] %vm328, %v342
        // Predicated region
        $region33: #{tpu_custom_call.1} parent=27 // pred_check
          %p344 = pneg %p77
        $region34: #{tpu_custom_call.1} parent=27 // pred_check_branch
          %346 = sbr.rel (%p344) target = $region36
        $region35: #{tpu_custom_call.1} parent=27 // pred_region
          %s348 = ssub.s32 16, 16
          %349 = vsyncadd [#allocation3], %s348
          %s351 = sshll.u32 [#allocation2], 4
          %s352 = int_to_ptr.vmem [resolvable:$true] %s351
          %354 = dma.vmem_to_hbm [thread:$0]  %s352, 16, %s2, [#allocation3]
        $region36: #{tpu_custom_call.1} parent=27 // pred_fallthru
          _
        // Predicated region
        $region37: #{tpu_custom_call.1} parent=27 // pred_check
          %p355 = pneg %p98
        $region38: #{tpu_custom_call.1} parent=27 // pred_check_branch
          %357 = sbr.rel (%p355) target = $region40
        $region39: #{tpu_custom_call.1} parent=27 // pred_region
          %s359 = ssub.s32 16, 16
          %360 = vsyncadd [#allocation5], %s359
          %s362 = sshll.u32 [#allocation4], 4
          %s363 = int_to_ptr.vmem [resolvable:$true] %s362
          %365 = dma.vmem_to_hbm [thread:$0]  %s363, 16, %s3, [#allocation5]
        $region40: #{tpu_custom_call.1} parent=27 // pred_fallthru
          _
        // Predicated region
        $region41: #{tpu_custom_call.1} parent=27 // pred_check
          %p366 = pneg %p77
        $region42: #{tpu_custom_call.1} parent=27 // pred_check_branch
          %368 = sbr.rel (%p366) target = $region44
        $region43: #{tpu_custom_call.1} parent=27 // pred_region
          %369 = dma.done [#allocation3], 16
        $region44: #{tpu_custom_call.1} parent=27 // pred_fallthru
          _
        // Predicated region
        $region45: #{tpu_custom_call.1} parent=27 // pred_check
          %p370 = pneg %p98
        $region46: #{tpu_custom_call.1} parent=27 // pred_check_branch
          %372 = sbr.rel (%p370) target = $region48
        $region47: #{tpu_custom_call.1} parent=27 // pred_region
          %373 = dma.done [#allocation5], 16
        $region48: #{tpu_custom_call.1} parent=27 // pred_fallthru
          _
      $region28: #{tpu_custom_call.1} parent=5 // pred_fallthru
        _
      %p374 = scmp.le.s32.totalorder 2, %s12
      // Predicated region
      $region49: #{tpu_custom_call.1} parent=5 // pred_check
        %p375 = pneg %p374
      $region50: #{tpu_custom_call.1} parent=5 // pred_check_branch
        %377 = sbr.rel (%p375) target = $region52
      $region51: #{tpu_custom_call.1} parent=5 // pred_region
        %s378 = ssub.s32 %s12, 2
      $region52: #{tpu_custom_call.1} parent=5 // pred_fallthru
        _
    $region6: #{tpu_custom_call.1} parent=1 // loop_footer
      %s16 = sadd.s32 1, %s12
    $region7: #{tpu_custom_call.1} parent=1 // loop_footer_branch
      %11 = sbr.rel target = $region3
    $region8: #{tpu_custom_call.1} parent=1 // loop_exit
      _
    %379 = vsyncpa [#allocation3], 1
    %s380 = scalar_lea.sflag [#allocation3], 1
    %381 = vsyncpa %s380, 1
    %382 = vsyncpa [#allocation5], 1

</llo_original>
